<compile_context>
chip_gen: v7x
topology: tpu7x:2x2x1
jax: 0.10.0
libtpu: 0.0.40
codegen_flags: <defaults>
</compile_context>

<pallas_src>
import functools
import math

import jax
import jax.numpy as jnp
from jax.experimental import pallas as pl
from jax.experimental.pallas import tpu as pltpu


def _round_up(x: int, m: int) -> int:
    return ((x + m - 1) // m) * m


def _cdiv(a: int, b: int) -> int:
    return -(-a // b)


# Conservative per-kernel VMEM budget: leaves headroom under v7x's 64 MiB
# physical VMEM and is far above v5e's 16 MiB scoped default (which we raise
# explicitly via vmem_limit_bytes).
_VMEM_TARGET = 40 * 1024 * 1024


def _vmem_bytes(tile_b: int, tile_n: int, in_f: int, itemsize: int = 4) -> int:
    # x and out tiles are double-buffered; weight/bias are also double-buffered
    # by default, but their block index is constant when num_n == 1 so they
    # still cross HBM exactly once.
    return itemsize * (2 * tile_b * in_f + 2 * tile_b * tile_n
                       + 2 * in_f * tile_n + 2 * tile_n)


def _select_tiles(B: int, in_f: int, out_p: int, max_tile_b: int = 1024):
    """Pick (tile_b, tile_n) so the whole weight stays VMEM-resident whenever
    possible; tile_n is always a divisor of out_p (multiple of 128)."""
    bp8 = _round_up(B, 8)
    tile_b = _round_up(min(max_tile_b, bp8), 8)
    tile_n = out_p

    # Prefer shrinking the batch tile first (keeps the weight resident).
    while tile_b > 256 and _vmem_bytes(tile_b, tile_n, in_f) > _VMEM_TARGET:
        tile_b = max(8, _round_up(tile_b // 2, 8))

    if _vmem_bytes(tile_b, tile_n, in_f) > _VMEM_TARGET:
        # Weight too big to keep resident: tile the out-feature axis with the
        # largest multiple-of-128 divisor of out_p that fits.
        m = out_p // 128
        tile_n = 128
        for d in sorted((d for d in range(1, m + 1) if m % d == 0), reverse=True):
            cand = 128 * d
            if _vmem_bytes(tile_b, cand, in_f) <= _VMEM_TARGET:
                tile_n = cand
                break
        while tile_b > 8 and _vmem_bytes(tile_b, tile_n, in_f) > _VMEM_TARGET:
            tile_b = max(8, _round_up(tile_b // 2, 8))

    return tile_b, tile_n


def _siren_kernel(x_ref, w_ref, b_ref, o_ref, *, omega_0: float):
    # x_ref: (TB, IN)   batch tile (K never padded)
    # w_ref: (IN, TN)   out-feature tile of the pre-transposed weight
    # b_ref: (1, TN)    matching bias tile
    # o_ref: (TB, TN)
    z = jnp.dot(x_ref[...], w_ref[...], preferred_element_type=jnp.float32)
    z = z + b_ref[...].astype(jnp.float32)
    if omega_0 != 1.0:          # static Python branch (fold_omega0 makes it 1.0)
        z = z * omega_0
    o_ref[...] = jnp.sin(z).astype(o_ref.dtype)


def siren_forward(x, weight_t, bias, omega_0: float = 1.0, *, max_tile_b: int = 1024):
    """SIREN forward pass: sin(omega_0 * (x @ weight_t + bias)).

    x:        (B, in_features)
    weight_t: (in_features, out_features)   nn.Linear weight, pre-transposed
    bias:     (out_features,)
    omega_0:  leave at 1.0 if the params were pre-scaled with fold_omega0().
    """
    B, in_f = x.shape
    in_f2, out_f = weight_t.shape
    assert in_f == in_f2 and bias.shape == (out_f,)

    # ---- tile / padded-size selection -------------------------------------
    out_p = _round_up(out_f, 128)            # lane-dense output width
    tile_b, tile_n = _select_tiles(B, in_f, out_p, max_tile_b=max_tile_b)
    num_b = _cdiv(B, tile_b)                  # ragged last batch tile is OK
    num_n = out_p // tile_n                   # exact (tile_n divides out_p)

    # ---- parameter column padding (tiny; a no-op if params stored padded) --
    # x is never padded: its K block dim equals the full array dim, and ragged
    # batch tiles rely on Pallas OOB semantics (garbage rows only feed dropped
    # output rows; each output row depends solely on its own x row).
    if out_p != out_f:
        weight_t = jnp.pad(weight_t, ((0, 0), (0, out_p - out_f)))
        bias = jnp.pad(bias, (0, out_p - out_f))
    bias2d = bias.reshape(1, out_p)

    kernel = functools.partial(_siren_kernel, omega_0=float(omega_0))

    itemsize = 4
    w_fetches = 1 if num_n == 1 else num_b    # weight re-read per batch tile if tiled over N
    cost = pl.CostEstimate(
        flops=2 * B * in_f * out_p,
        transcendentals=B * out_p,
        bytes_accessed=itemsize * (B * in_f                      # x read once
                                   + w_fetches * in_f * out_p    # weight
                                   + out_p                       # bias
                                   + B * out_p),                 # output
    )

    needed = _vmem_bytes(tile_b, tile_n, in_f)
    vmem_limit_bytes = int(max(32 << 20, needed + (4 << 20)))

    out = pl.pallas_call(
        kernel,
        out_shape=jax.ShapeDtypeStruct((B, out_p), x.dtype),
        grid_spec=pltpu.PrefetchScalarGridSpec(
            num_scalar_prefetch=0,
            # Batch leading (shardable across v7x's 2 TCs); out-feature tiles
            # inner.  With num_n == 1 the weight/bias block index is constant
            # across the whole grid, so they are DMA'd exactly once.
            grid=(num_b, num_n),
            in_specs=[
                pl.BlockSpec((tile_b, in_f), lambda i, j: (i, 0)),   # x
                pl.BlockSpec((in_f, tile_n), lambda i, j: (0, j)),   # W^T
                pl.BlockSpec((1, tile_n), lambda i, j: (0, j)),      # bias
            ],
            out_specs=pl.BlockSpec((tile_b, tile_n), lambda i, j: (i, j)),
        ),
        compiler_params=pltpu.CompilerParams(
            dimension_semantics=("parallel", "parallel"),
            vmem_limit_bytes=vmem_limit_bytes,
        ),
        cost_estimate=cost,
    )(x, weight_t, bias2d)

    return out[:, :out_f] if out_p != out_f else out


def fold_omega0(weight_t, bias, omega_0: float):
    """sin(omega_0*(xW^T+b)) == sin(x(omega_0*W)^T + omega_0*b): one-time param
    rescale so the kernel skips the per-element omega_0 multiply."""
    return weight_t * omega_0, bias * omega_0


def init_siren_params(key, in_features, out_features, omega_0=30.0, is_first=False):
    """SIREN init (matches SIREN.init_weights). Weight returned pre-transposed
    as (in_features, out_features) so the forward pass never transposes."""
    kw, kb = jax.random.split(key)
    if is_first:
        bound = 1.0 / in_features
    else:
        bound = math.sqrt(6.0 / in_features) / omega_0
    weight_t = jax.random.uniform(
        kw, (in_features, out_features), jnp.float32, minval=-bound, maxval=bound
    )
    # nn.Linear bias keeps its default init: U(-1/sqrt(in), 1/sqrt(in))
    b_bound = 1.0 / math.sqrt(in_features)
    bias = jax.random.uniform(
        kb, (out_features,), jnp.float32, minval=-b_bound, maxval=b_bound
    )
    return weight_t, bias


# TODO(synk): full-network fusion (all SIREN layers resident in VMEM, activations
# ping-ponging between two scratch buffers) is the next big mem-bound win; this
# file implements the single-layer forward that matches the PyTorch module.


if __name__ == "__main__":
    key = jax.random.PRNGKey(0)
    k_x, k_p = jax.random.split(key)

    batch = 32
    in_features = 16
    out_features = 32
    omega_0 = 30.0

    x = jax.random.normal(k_x, (batch, in_features), jnp.float32)
    weight_t, bias = init_siren_params(
        k_p, in_features, out_features, omega_0=omega_0, is_first=False
    )

    # Pure-JAX reference of the PyTorch forward: sin(omega_0 * (x @ W^T + b)).
    ref = jnp.sin(omega_0 * (x @ weight_t + bias))

    # Preferred path: omega_0 folded into the params once (kernel does plain sin).
    w_s, b_s = fold_omega0(weight_t, bias, omega_0)
    out = jax.block_until_ready(siren_forward(x, w_s, b_s))
    assert out.shape == (batch, out_features)
    assert jnp.allclose(out, ref, atol=1e-5, rtol=1e-5)

    # Also validate the in-kernel omega_0 path (unfolded params).
    out2 = jax.block_until_ready(siren_forward(x, weight_t, bias, omega_0=omega_0))
    assert jnp.allclose(out2, ref, atol=1e-5, rtol=1e-5)

    print("KERNEL_OK")
</pallas_src>

<mosaic_0001>
module attributes {stable_mosaic.version = 11 : i64} {
  func.func @_siren_kernel(%arg0: i32, %arg1: i32, %arg2: memref<32x16xf32, #tpu.memory_space<vmem>>, %arg3: memref<16x128xf32, #tpu.memory_space<vmem>>, %arg4: memref<1x128xf32, #tpu.memory_space<vmem>>, %arg5: memref<32x128xf32, #tpu.memory_space<vmem>>) attributes {dimension_semantics = [#tpu.dimension_semantics<parallel>, #tpu.dimension_semantics<parallel>], iteration_bounds = array<i64: 1, 1>, scalar_prefetch = 0 : i64, scratch_operands = 0 : i64, tpu.core_type = #tpu.core_type<tc>, window_params = [{transform_indices = @transform_0, window_bounds = array<i64: 32, 16>}, {transform_indices = @transform_1, window_bounds = array<i64: 16, 128>}, {transform_indices = @transform_2, window_bounds = array<i64: 1, 128>}, {transform_indices = @transform_3, window_bounds = array<i64: 32, 128>}]} {
    %c0 = arith.constant 0 : index
    %c0_0 = arith.constant 0 : index
    %0 = vector.load %arg2[%c0, %c0_0] : memref<32x16xf32, #tpu.memory_space<vmem>>, vector<32x16xf32>
    %c0_1 = arith.constant 0 : index
    %c0_2 = arith.constant 0 : index
    %1 = vector.load %arg3[%c0_1, %c0_2] : memref<16x128xf32, #tpu.memory_space<vmem>>, vector<16x128xf32>
    %cst = arith.constant dense<0.000000e+00> : vector<32x128xf32>
    %2 = tpu.matmul %0, %1, %cst {dimension_numbers = #tpu.dot_dimension_numbers<[1], [0], [0], [1], [0, 0, 1, 1], [], []>} : vector<32x16xf32>, vector<16x128xf32>, vector<32x128xf32> -> vector<32x128xf32>
    %c0_3 = arith.constant 0 : index
    %c0_4 = arith.constant 0 : index
    %3 = vector.load %arg4[%c0_3, %c0_4] : memref<1x128xf32, #tpu.memory_space<vmem>>, vector<1x128xf32>
    %4 = vector.broadcast %3 : vector<1x128xf32> to vector<32x128xf32>
    %5 = arith.addf %2, %4 : vector<32x128xf32>
    %6 = math.sin %5 : vector<32x128xf32>
    %c0_5 = arith.constant 0 : index
    %c0_6 = arith.constant 0 : index
    %7 = vector.load %arg5[%c0_5, %c0_6] : memref<32x128xf32, #tpu.memory_space<vmem>>, vector<32x128xf32>
    tpu.vector_store %arg5[%c0_5, %c0_6], %6 {strides = array<i32>} : memref<32x128xf32, #tpu.memory_space<vmem>>, vector<32x128xf32>,
    return
  }
  func.func @transform_0(%arg0: i32, %arg1: i32) -> (i32, i32) {
    %c0_i32 = arith.constant 0 : i32
    %c0_i32_0 = arith.constant 0 : i32
    return %arg0, %c0_i32 : i32, i32
  }
  func.func @transform_1(%arg0: i32, %arg1: i32) -> (i32, i32) {
    %c0_i32 = arith.constant 0 : i32
    %c0_i32_0 = arith.constant 0 : i32
    return %c0_i32, %arg1 : i32, i32
  }
  func.func @transform_2(%arg0: i32, %arg1: i32) -> (i32, i32) {
    %c0_i32 = arith.constant 0 : i32
    %c0_i32_0 = arith.constant 0 : i32
    return %c0_i32, %arg1 : i32, i32
  }
  func.func @transform_3(%arg0: i32, %arg1: i32) -> (i32, i32) {
    %c0_i32 = arith.constant 0 : i32
    return %arg0, %arg1 : i32, i32
  }
}

</mosaic_0001>

<llo_original>
// kernel: tpu_custom_call.1
$region0: #{tpu_custom_call.1}
  #allocation0 [shape = 'u32[]', space=smem, size = 0x4, offset = 0x4, fixed_abs, tag = 'smem constant byte address 0x4 - core index']
  #allocation1 [shape = 'u32[144,128]{1,0:T(1,128)}', space=vmem, size = 0x12000, scoped, tag = 'internal scratch']
  %s0 = inlined_call_operand.vmem [shape: f32[32,16], index: 0, kind: input, shape index: {}]
  %s1 = inlined_call_operand.vmem [shape: f32[16,128], index: 1, kind: input, shape index: {}]
  %s2 = inlined_call_operand.vmem [shape: f32[1,128], index: 2, kind: input, shape index: {}]
  %s3 = inlined_call_operand.hbm [shape: f32[32,128], index: 3, kind: output, shape index: {}]
  %s4 = sld [smem:[#allocation0]]
  $region22: #{tpu_custom_call.1} parent=0
    _
  %s6 = ssub.s32 1, %s4
  %s7 = scalar_select 0, %s6, %s4
  $region1: #{tpu_custom_call.1} parent=0
    #allocation2 [shape = 'u8[16384]{0}', space=vmem, size = 0x4000, scoped, tag = 'output window, operand 0, single buffered']
    #allocation3 [shape = 's32[1]{0}', space=sflag, size = 0x4, scoped, tag = 'scoped memory for tpu_custom_call.1']
    %8 = vsyncpa [#allocation3], 0
    // Predicated region
    $region2: #{tpu_custom_call.1} parent=1 // pred_check
      _
    $region3: #{tpu_custom_call.1} parent=1 // pred_check_branch
      %10 = sbr.rel (0) target = $region5
    $region4: #{tpu_custom_call.1} parent=1 // pred_region
      _
    $region5: #{tpu_custom_call.1} parent=1 // pred_fallthru
      _
    // Predicated region
    $region6: #{tpu_custom_call.1} parent=1 // pred_check
      _
    $region7: #{tpu_custom_call.1} parent=1 // pred_check_branch
      %12 = sbr.rel (0) target = $region9
    $region8: #{tpu_custom_call.1} parent=1 // pred_region
      _
    $region9: #{tpu_custom_call.1} parent=1 // pred_fallthru
      _
    // Predicated region
    $region10: #{tpu_custom_call.1} parent=1 // pred_check
      _
    $region11: #{tpu_custom_call.1} parent=1 // pred_check_branch
      %14 = sbr.rel (0) target = $region13
    $region12: #{tpu_custom_call.1} parent=1 // pred_region
      _
    $region13: #{tpu_custom_call.1} parent=1 // pred_fallthru
      _
    %v15 = vld [vmem:[%s0] sm:$0xff]
    %v16 = vld [vmem:[%s0 + $0x8] sm:$0xff]
    %v17 = vld [vmem:[%s0 + $0x10] sm:$0xff]
    %v18 = vld [vmem:[%s0 + $0x18] sm:$0xff]
    %v19 = vld [vmem:[%s1] sm:$0xff]
    %v20 = vld [vmem:[%s1 + $0x8] sm:$0xff]
    %v21 = vld [vmem:[%s2] sm:$0x1]
    %v23 = vlaneseq
    %v24 = vshrl.u32 %v23, 7
    %v25 = vsub.s32 0, %v24
    %v26 = vrot.slane %v21, %v25
    %vm28 = vcmask 130048
    %v30 = vsel %vm28, %v15, 0
    %v33 = vsel %vm28, %v16, 0
    %v36 = vsel %vm28, %v17, 0
    %v39 = vsel %vm28, %v18, 0
    %41 = vmatprep.subr.mxu0 0.0
    %42 = vmatpush1.msra.mxu0 %v19
    %43 = vmatprep.subr.mxu0 0.0
    %44 = vmatpush1.msra.mxu0 %v20
    %45 = vmatprep.subr.mxu0 0.0
    %46 = vmatpush1.msra.mxu0 0.0
    %47 = vmatprep.subr.mxu0 0.0
    %48 = vmatpush1.msra.mxu0 0.0
    %49 = vmatprep.subr.mxu0 0.0
    %50 = vmatpush1.msra.mxu0 0.0
    %51 = vmatprep.subr.mxu0 0.0
    %52 = vmatpush1.msra.mxu0 0.0
    %53 = vmatprep.subr.mxu0 0.0
    %54 = vmatpush1.msra.mxu0 0.0
    %55 = vmatprep.subr.mxu0 0.0
    %56 = vmatpush1.msra.mxu0 0.0
    %57 = vmatprep.subr.mxu0 0.0
    %58 = vmatpush1.msra.mxu0 0.0
    %59 = vmatprep.subr.mxu0 0.0
    %60 = vmatpush1.msra.mxu0 0.0
    %61 = vmatprep.subr.mxu0 0.0
    %62 = vmatpush1.msra.mxu0 0.0
    %63 = vmatprep.subr.mxu0 0.0
    %64 = vmatpush1.msra.mxu0 0.0
    %65 = vmatprep.subr.mxu0 0.0
    %66 = vmatpush1.msra.mxu0 0.0
    %67 = vmatprep.subr.mxu0 0.0
    %68 = vmatpush1.msra.mxu0 0.0
    %69 = vmatprep.subr.mxu0 0.0
    %70 = vmatpush1.msra.mxu0 0.0
    %71 = vmatprep.subr.mxu0 0.0
    %72 = vmatpush1.msra.mxu0 0.0
    %73 = vmatprep.subr.mxu0 0.0
    %74 = vmatpush1.msra.mxu0 0.0
    %75 = vmatprep.subr.mxu0 0.0
    %76 = vmatpush1.msra.mxu0 0.0
    %77 = vmatprep.subr.mxu0 0.0
    %78 = vmatpush1.msra.mxu0 0.0
    %79 = vmatprep.subr.mxu0 0.0
    %80 = vmatpush1.msra.mxu0 0.0
    %81 = vmatprep.subr.mxu0 0.0
    %82 = vmatpush1.msra.mxu0 0.0
    %83 = vmatprep.subr.mxu0 0.0
    %84 = vmatpush1.msra.mxu0 0.0
    %85 = vmatprep.subr.mxu0 0.0
    %86 = vmatpush1.msra.mxu0 0.0
    %87 = vmatprep.subr.mxu0 0.0
    %88 = vmatpush1.msra.mxu0 0.0
    %89 = vmatprep.subr.mxu0 0.0
    %90 = vmatpush1.msra.mxu0 0.0
    %91 = vmatprep.subr.mxu0 0.0
    %92 = vmatpush1.msra.mxu0 0.0
    %93 = vmatprep.subr.mxu0 0.0
    %94 = vmatpush1.msra.mxu0 0.0
    %95 = vmatprep.subr.mxu0 0.0
    %96 = vmatpush1.msra.mxu0 0.0
    %97 = vmatprep.subr.mxu0 0.0
    %98 = vmatpush1.msra.mxu0 0.0
    %99 = vmatprep.subr.mxu0 0.0
    %100 = vmatpush1.msra.mxu0 0.0
    %101 = vmatprep.subr.mxu0 0.0
    %102 = vmatpush1.msra.mxu0 0.0
    %103 = vmatprep.subr.mxu0 0.0
    %104 = vmatpush1.msra.mxu0 0.0
    %105 = vmatprep.mubr.f32.mxu0 0.0
    %106 = vmatmul.mubr.f32.gmra.mrb[0].mxu0 %v30
    %v107 = vpop.f32.mrb[0].mxu0
    %v108 = vadd.f32 %v26, %v107
    %v109 = vpop.f32.mrb[0].mxu0
    %110 = vmatprep.mubr.f32.mxu0 0.0
    %111 = vmatmul.mubr.f32.gmra.mrb[0].mxu0 %v33
    %v112 = vpop.f32.mrb[0].mxu0
    %v113 = vadd.f32 %v26, %v112
    %v114 = vpop.f32.mrb[0].mxu0
    %115 = vmatprep.mubr.f32.mxu0 0.0
    %116 = vmatmul.mubr.f32.gmra.mrb[0].mxu0 %v36
    %v117 = vpop.f32.mrb[0].mxu0
    %v118 = vadd.f32 %v26, %v117
    %v119 = vpop.f32.mrb[0].mxu0
    %120 = vmatprep.mubr.f32.mxu0 0.0
    %121 = vmatmul.mubr.f32.gmra.mrb[0].mxu0 %v39
    %v122 = vpop.f32.mrb[0].mxu0
    %v123 = vadd.f32 %v26, %v122
    %v124 = vpop.f32.mrb[0].mxu0
    %125 = vdwg.mxu0
    %v126 = vand.u32 2147483647, %v108
    %vm127 = vcmp.le.f32.partialorder %v126, 0.7853982
    %vm128 = vcmp.lt.s32.totalorder %v108, 0
    %v129 = vand.u32 %v108, 2139095040
    %v130 = vshrl.u32 %v129, 23
    %v131 = vsub.s32 %v130, 127
    %v132 = vand.u32 2147483647, %v108
    %v133 = vand.u32 %v132, 8388607
    %v134 = vor.u32 %v133, 8388608
    %v135 = vsub.s32 0, %v134
    %v136 = vadd.s32 %v131, 1
    %vm137 = vcmp.gt.s32.totalorder %v136, 0
    %v138 = vsel %vm137, %v136, 0
    %v139 = vshrl.u32 %v138, 5
    %v140 = vand.u32 %v138, 31
    %v141 = vsub.s32 32, %v140
    %v142 = vshrl.u32 683565275, %v141
    %v143 = vshll.u32 683565275, %v140
    %v144 = vshrl.u32 2475754826, %v141
    %v145 = vor.u32 %v143, %v144
    %v146 = vshll.u32 2475754826, %v140
    %v147 = vshrl.u32 2131351028, %v141
    %v148 = vor.u32 %v146, %v147
    %v149 = vshll.u32 2131351028, %v140
    %v150 = vshrl.u32 2102212464, %v141
    %v151 = vor.u32 %v149, %v150
    %v152 = vshll.u32 2102212464, %v140
    %v153 = vshrl.u32 920167782, %v141
    %v154 = vor.u32 %v152, %v153
    %v155 = vshll.u32 920167782, %v140
    %v156 = vshrl.u32 1326507024, %v141
    %v157 = vor.u32 %v155, %v156
    %vm158 = vcmp.lt.s32.totalorder %v139, 1
    %vm159 = vcmp.lt.s32.totalorder %v139, 2
    %vm160 = vcmp.lt.s32.totalorder %v139, 3
    %vm161 = vcmp.lt.s32.totalorder %v139, 4
    %v162 = vsel %vm158, %v142, %v145
    %v163 = vsel %vm161, %v151, 2102212464
    %v164 = vsel %vm160, %v148, %v163
    %v165 = vsel %vm159, %v162, %v164
    %v166 = vsel %vm158, %v145, %v148
    %v167 = vsel %vm161, %v154, 920167782
    %v168 = vsel %vm160, %v151, %v167
    %v169 = vsel %vm159, %v166, %v168
    %v170 = vsel %vm158, %v148, %v151
    %v171 = vsel %vm161, %v157, 1326507024
    %v172 = vsel %vm160, %v154, %v171
    %v173 = vsel %vm159, %v170, %v172
    %v174 = vshll.u32 %v134, 8
    %v175 = vmul.u32.u64.compose %v174, %v173
    %v176 = vextract.low.u32 %v175
    %v177 = vextract.high.u32 %v175
    %v178 = vmul.u32.u64.compose %v174, %v169
    %v179 = vextract.low.u32 %v178
    %v180 = vextract.high.u32 %v178
    %v181 = vmul.u32 %v174, %v165
    %v182 = vadd.s32 %v177, %v179
    %vm183 = vc.u32 %v177, %v179
    %v184 = vadd.s32 %v180, 1
    %v185 = vsel %vm183, %v184, %v180
    %v186 = vadd.s32 %v181, %v185
    %v187 = vadd.s32 %v186, 536870912
    %v188 = vshrl.u32 %v187, 30
    %v189 = vshll.u32 %v188, 30
    %v190 = vsub.s32 %v186, %v189
    %vm191 = vcmp.lt.s32.totalorder %v190, 0
    %v192 = vsub.s32 0, %v190
    %v193 = vsel %vm191, %v192, %v190
    %v194 = vclz %v193
    %v195 = vsub.s32 %v194, 2
    %vm196 = vcmp.gt.s32.totalorder 0, %v195
    %v197 = vsel %vm196, 0, %v195
    %v198 = vsub.s32 32, %v197
    %v199 = vshll.u32 %v190, %v197
    %v200 = vshrl.u32 %v182, %v198
    %v201 = vor.u32 %v199, %v200
    %v202 = vsub.s32 4294967266, %v197
    %v203 = vadd.s32 %v202, 127
    %v204 = vshll.u32 %v203, 23
    %v205 = vor.u32 4788187, %v204
    %v206 = vand.u32 2147483647, %v205
    %v208 = vcvt.s32.f32 %v201
    %v209 = vmul.f32 %v208, %v206
    %v210 = vxor.u32 %v209, 2147483648
    %v211 = vsel %vm128, %v210, %v209
    %v212 = vsub.s32 4, %v188
    %v213 = vsel %vm128, %v212, %v188
    %v214 = vsel %vm127, %v108, %v211
    %v215 = vsel %vm127, 0, %v213
    %v216 = vcosq.f32.pop %v214
    %v217 = vsinq.f32.pop %v214
    %vm218 = vweird.f32 %v108
    %v219 = vadd.s32 %v215, 3
    %v220 = vand.u32 %v219, 3
    %vm221 = vcmp.lt.s32.totalorder %v220, 2
    %vm222 = vcmp.eq.s32.totalorder %v220, 0
    %v223 = vxor.u32 %v217, 2147483648
    %v224 = vsel %vm222, %v216, %v223
    %vm225 = vcmp.eq.s32.totalorder %v220, 2
    %v226 = vxor.u32 %v216, 2147483648
    %v227 = vsel %vm225, %v226, %v217
    %v228 = vsel %vm221, %v224, %v227
    %v229 = vsel %vm218, nan, %v228
    %v230 = vand.u32 2147483647, %v113
    %vm231 = vcmp.le.f32.partialorder %v230, 0.7853982
    %vm232 = vcmp.lt.s32.totalorder %v113, 0
    %v233 = vand.u32 %v113, 2139095040
    %v234 = vshrl.u32 %v233, 23
    %v235 = vsub.s32 %v234, 127
    %v236 = vand.u32 2147483647, %v113
    %v237 = vand.u32 %v236, 8388607
    %v238 = vor.u32 %v237, 8388608
    %v239 = vsub.s32 0, %v238
    %v240 = vadd.s32 %v235, 1
    %vm241 = vcmp.gt.s32.totalorder %v240, 0
    %v242 = vsel %vm241, %v240, 0
    %v243 = vshrl.u32 %v242, 5
    %v244 = vand.u32 %v242, 31
    %v245 = vsub.s32 32, %v244
    %v246 = vshrl.u32 683565275, %v245
    %v247 = vshll.u32 683565275, %v244
    %v248 = vshrl.u32 2475754826, %v245
    %v249 = vor.u32 %v247, %v248
    %v250 = vshll.u32 2475754826, %v244
    %v251 = vshrl.u32 2131351028, %v245
    %v252 = vor.u32 %v250, %v251
    %v253 = vshll.u32 2131351028, %v244
    %v254 = vshrl.u32 2102212464, %v245
    %v255 = vor.u32 %v253, %v254
    %v256 = vshll.u32 2102212464, %v244
    %v257 = vshrl.u32 920167782, %v245
    %v258 = vor.u32 %v256, %v257
    %v259 = vshll.u32 920167782, %v244
    %v260 = vshrl.u32 1326507024, %v245
    %v261 = vor.u32 %v259, %v260
    %vm262 = vcmp.lt.s32.totalorder %v243, 1
    %vm263 = vcmp.lt.s32.totalorder %v243, 2
    %vm264 = vcmp.lt.s32.totalorder %v243, 3
    %vm265 = vcmp.lt.s32.totalorder %v243, 4
    %v266 = vsel %vm262, %v246, %v249
    %v267 = vsel %vm265, %v255, 2102212464
    %v268 = vsel %vm264, %v252, %v267
    %v269 = vsel %vm263, %v266, %v268
    %v270 = vsel %vm262, %v249, %v252
    %v271 = vsel %vm265, %v258, 920167782
    %v272 = vsel %vm264, %v255, %v271
    %v273 = vsel %vm263, %v270, %v272
    %v274 = vsel %vm262, %v252, %v255
    %v275 = vsel %vm265, %v261, 1326507024
    %v276 = vsel %vm264, %v258, %v275
    %v277 = vsel %vm263, %v274, %v276
    %v278 = vshll.u32 %v238, 8
    %v279 = vmul.u32.u64.compose %v278, %v277
    %v280 = vextract.low.u32 %v279
    %v281 = vextract.high.u32 %v279
    %v282 = vmul.u32.u64.compose %v278, %v273
    %v283 = vextract.low.u32 %v282
    %v284 = vextract.high.u32 %v282
    %v285 = vmul.u32 %v278, %v269
    %v286 = vadd.s32 %v281, %v283
    %vm287 = vc.u32 %v281, %v283
    %v288 = vadd.s32 %v284, 1
    %v289 = vsel %vm287, %v288, %v284
    %v290 = vadd.s32 %v285, %v289
    %v291 = vadd.s32 %v290, 536870912
    %v292 = vshrl.u32 %v291, 30
    %v293 = vshll.u32 %v292, 30
    %v294 = vsub.s32 %v290, %v293
    %vm295 = vcmp.lt.s32.totalorder %v294, 0
    %v296 = vsub.s32 0, %v294
    %v297 = vsel %vm295, %v296, %v294
    %v298 = vclz %v297
    %v299 = vsub.s32 %v298, 2
    %vm300 = vcmp.gt.s32.totalorder 0, %v299
    %v301 = vsel %vm300, 0, %v299
    %v302 = vsub.s32 32, %v301
    %v303 = vshll.u32 %v294, %v301
    %v304 = vshrl.u32 %v286, %v302
    %v305 = vor.u32 %v303, %v304
    %v306 = vsub.s32 4294967266, %v301
    %v307 = vadd.s32 %v306, 127
    %v308 = vshll.u32 %v307, 23
    %v309 = vor.u32 4788187, %v308
    %v310 = vand.u32 2147483647, %v309
    %v312 = vcvt.s32.f32 %v305
    %v313 = vmul.f32 %v312, %v310
    %v314 = vxor.u32 %v313, 2147483648
    %v315 = vsel %vm232, %v314, %v313
    %v316 = vsub.s32 4, %v292
    %v317 = vsel %vm232, %v316, %v292
    %v318 = vsel %vm231, %v113, %v315
    %v319 = vsel %vm231, 0, %v317
    %v320 = vcosq.f32.pop %v318
    %v321 = vsinq.f32.pop %v318
    %vm322 = vweird.f32 %v113
    %v323 = vadd.s32 %v319, 3
    %v324 = vand.u32 %v323, 3
    %vm325 = vcmp.lt.s32.totalorder %v324, 2
    %vm326 = vcmp.eq.s32.totalorder %v324, 0
    %v327 = vxor.u32 %v321, 2147483648
    %v328 = vsel %vm326, %v320, %v327
    %vm329 = vcmp.eq.s32.totalorder %v324, 2
    %v330 = vxor.u32 %v320, 2147483648
    %v331 = vsel %vm329, %v330, %v321
    %v332 = vsel %vm325, %v328, %v331
    %v333 = vsel %vm322, nan, %v332
    %v334 = vand.u32 2147483647, %v118
    %vm335 = vcmp.le.f32.partialorder %v334, 0.7853982
    %vm336 = vcmp.lt.s32.totalorder %v118, 0
    %v337 = vand.u32 %v118, 2139095040
    %v338 = vshrl.u32 %v337, 23
    %v339 = vsub.s32 %v338, 127
    %v340 = vand.u32 2147483647, %v118
    %v341 = vand.u32 %v340, 8388607
    %v342 = vor.u32 %v341, 8388608
    %v343 = vsub.s32 0, %v342
    %v344 = vadd.s32 %v339, 1
    %vm345 = vcmp.gt.s32.totalorder %v344, 0
    %v346 = vsel %vm345, %v344, 0
    %v347 = vshrl.u32 %v346, 5
    %v348 = vand.u32 %v346, 31
    %v349 = vsub.s32 32, %v348
    %v350 = vshrl.u32 683565275, %v349
    %v351 = vshll.u32 683565275, %v348
    %v352 = vshrl.u32 2475754826, %v349
    %v353 = vor.u32 %v351, %v352
    %v354 = vshll.u32 2475754826, %v348
    %v355 = vshrl.u32 2131351028, %v349
    %v356 = vor.u32 %v354, %v355
    %v357 = vshll.u32 2131351028, %v348
    %v358 = vshrl.u32 2102212464, %v349
    %v359 = vor.u32 %v357, %v358
    %v360 = vshll.u32 2102212464, %v348
    %v361 = vshrl.u32 920167782, %v349
    %v362 = vor.u32 %v360, %v361
    %v363 = vshll.u32 920167782, %v348
    %v364 = vshrl.u32 1326507024, %v349
    %v365 = vor.u32 %v363, %v364
    %vm366 = vcmp.lt.s32.totalorder %v347, 1
    %vm367 = vcmp.lt.s32.totalorder %v347, 2
    %vm368 = vcmp.lt.s32.totalorder %v347, 3
    %vm369 = vcmp.lt.s32.totalorder %v347, 4
    %v370 = vsel %vm366, %v350, %v353
    %v371 = vsel %vm369, %v359, 2102212464
    %v372 = vsel %vm368, %v356, %v371
    %v373 = vsel %vm367, %v370, %v372
    %v374 = vsel %vm366, %v353, %v356
    %v375 = vsel %vm369, %v362, 920167782
    %v376 = vsel %vm368, %v359, %v375
    %v377 = vsel %vm367, %v374, %v376
    %v378 = vsel %vm366, %v356, %v359
    %v379 = vsel %vm369, %v365, 1326507024
    %v380 = vsel %vm368, %v362, %v379
    %v381 = vsel %vm367, %v378, %v380
    %v382 = vshll.u32 %v342, 8
    %v383 = vmul.u32.u64.compose %v382, %v381
    %v384 = vextract.low.u32 %v383
    %v385 = vextract.high.u32 %v383
    %v386 = vmul.u32.u64.compose %v382, %v377
    %v387 = vextract.low.u32 %v386
    %v388 = vextract.high.u32 %v386
    %v389 = vmul.u32 %v382, %v373
    %v390 = vadd.s32 %v385, %v387
    %vm391 = vc.u32 %v385, %v387
    %v392 = vadd.s32 %v388, 1
    %v393 = vsel %vm391, %v392, %v388
    %v394 = vadd.s32 %v389, %v393
    %v395 = vadd.s32 %v394, 536870912
    %v396 = vshrl.u32 %v395, 30
    %v397 = vshll.u32 %v396, 30
    %v398 = vsub.s32 %v394, %v397
    %vm399 = vcmp.lt.s32.totalorder %v398, 0
    %v400 = vsub.s32 0, %v398
    %v401 = vsel %vm399, %v400, %v398
    %v402 = vclz %v401
    %v403 = vsub.s32 %v402, 2
    %vm404 = vcmp.gt.s32.totalorder 0, %v403
    %v405 = vsel %vm404, 0, %v403
    %v406 = vsub.s32 32, %v405
    %v407 = vshll.u32 %v398, %v405
    %v408 = vshrl.u32 %v390, %v406
    %v409 = vor.u32 %v407, %v408
    %v410 = vsub.s32 4294967266, %v405
    %v411 = vadd.s32 %v410, 127
    %v412 = vshll.u32 %v411, 23
    %v413 = vor.u32 4788187, %v412
    %v414 = vand.u32 2147483647, %v413
    %v416 = vcvt.s32.f32 %v409
    %v417 = vmul.f32 %v416, %v414
    %v418 = vxor.u32 %v417, 2147483648
    %v419 = vsel %vm336, %v418, %v417
    %v420 = vsub.s32 4, %v396
    %v421 = vsel %vm336, %v420, %v396
    %v422 = vsel %vm335, %v118, %v419
    %v423 = vsel %vm335, 0, %v421
    %v424 = vcosq.f32.pop %v422
    %v425 = vsinq.f32.pop %v422
    %vm426 = vweird.f32 %v118
    %v427 = vadd.s32 %v423, 3
    %v428 = vand.u32 %v427, 3
    %vm429 = vcmp.lt.s32.totalorder %v428, 2
    %vm430 = vcmp.eq.s32.totalorder %v428, 0
    %v431 = vxor.u32 %v425, 2147483648
    %v432 = vsel %vm430, %v424, %v431
    %vm433 = vcmp.eq.s32.totalorder %v428, 2
    %v434 = vxor.u32 %v424, 2147483648
    %v435 = vsel %vm433, %v434, %v425
    %v436 = vsel %vm429, %v432, %v435
    %v437 = vsel %vm426, nan, %v436
    %v438 = vand.u32 2147483647, %v123
    %vm439 = vcmp.le.f32.partialorder %v438, 0.7853982
    %vm440 = vcmp.lt.s32.totalorder %v123, 0
    %v441 = vand.u32 %v123, 2139095040
    %v442 = vshrl.u32 %v441, 23
    %v443 = vsub.s32 %v442, 127
    %v444 = vand.u32 2147483647, %v123
    %v445 = vand.u32 %v444, 8388607
    %v446 = vor.u32 %v445, 8388608
    %v447 = vsub.s32 0, %v446
    %v448 = vadd.s32 %v443, 1
    %vm449 = vcmp.gt.s32.totalorder %v448, 0
    %v450 = vsel %vm449, %v448, 0
    %v451 = vshrl.u32 %v450, 5
    %v452 = vand.u32 %v450, 31
    %v453 = vsub.s32 32, %v452
    %v454 = vshrl.u32 683565275, %v453
    %v455 = vshll.u32 683565275, %v452
    %v456 = vshrl.u32 2475754826, %v453
    %v457 = vor.u32 %v455, %v456
    %v458 = vshll.u32 2475754826, %v452
    %v459 = vshrl.u32 2131351028, %v453
    %v460 = vor.u32 %v458, %v459
    %v461 = vshll.u32 2131351028, %v452
    %v462 = vshrl.u32 2102212464, %v453
    %v463 = vor.u32 %v461, %v462
    %v464 = vshll.u32 2102212464, %v452
    %v465 = vshrl.u32 920167782, %v453
    %v466 = vor.u32 %v464, %v465
    %v467 = vshll.u32 920167782, %v452
    %v468 = vshrl.u32 1326507024, %v453
    %v469 = vor.u32 %v467, %v468
    %vm470 = vcmp.lt.s32.totalorder %v451, 1
    %vm471 = vcmp.lt.s32.totalorder %v451, 2
    %vm472 = vcmp.lt.s32.totalorder %v451, 3
    %vm473 = vcmp.lt.s32.totalorder %v451, 4
    %v474 = vsel %vm470, %v454, %v457
    %v475 = vsel %vm473, %v463, 2102212464
    %v476 = vsel %vm472, %v460, %v475
    %v477 = vsel %vm471, %v474, %v476
    %v478 = vsel %vm470, %v457, %v460
    %v479 = vsel %vm473, %v466, 920167782
    %v480 = vsel %vm472, %v463, %v479
    %v481 = vsel %vm471, %v478, %v480
    %v482 = vsel %vm470, %v460, %v463
    %v483 = vsel %vm473, %v469, 1326507024
    %v484 = vsel %vm472, %v466, %v483
    %v485 = vsel %vm471, %v482, %v484
    %v486 = vshll.u32 %v446, 8
    %v487 = vmul.u32.u64.compose %v486, %v485
    %v488 = vextract.low.u32 %v487
    %v489 = vextract.high.u32 %v487
    %v490 = vmul.u32.u64.compose %v486, %v481
    %v491 = vextract.low.u32 %v490
    %v492 = vextract.high.u32 %v490
    %v493 = vmul.u32 %v486, %v477
    %v494 = vadd.s32 %v489, %v491
    %vm495 = vc.u32 %v489, %v491
    %v496 = vadd.s32 %v492, 1
    %v497 = vsel %vm495, %v496, %v492
    %v498 = vadd.s32 %v493, %v497
    %v499 = vadd.s32 %v498, 536870912
    %v500 = vshrl.u32 %v499, 30
    %v501 = vshll.u32 %v500, 30
    %v502 = vsub.s32 %v498, %v501
    %vm503 = vcmp.lt.s32.totalorder %v502, 0
    %v504 = vsub.s32 0, %v502
    %v505 = vsel %vm503, %v504, %v502
    %v506 = vclz %v505
    %v507 = vsub.s32 %v506, 2
    %vm508 = vcmp.gt.s32.totalorder 0, %v507
    %v509 = vsel %vm508, 0, %v507
    %v510 = vsub.s32 32, %v509
    %v511 = vshll.u32 %v502, %v509
    %v512 = vshrl.u32 %v494, %v510
    %v513 = vor.u32 %v511, %v512
    %v514 = vsub.s32 4294967266, %v509
    %v515 = vadd.s32 %v514, 127
    %v516 = vshll.u32 %v515, 23
    %v517 = vor.u32 4788187, %v516
    %v518 = vand.u32 2147483647, %v517
    %v520 = vcvt.s32.f32 %v513
    %v521 = vmul.f32 %v520, %v518
    %v522 = vxor.u32 %v521, 2147483648
    %v523 = vsel %vm440, %v522, %v521
    %v524 = vsub.s32 4, %v500
    %v525 = vsel %vm440, %v524, %v500
    %v526 = vsel %vm439, %v123, %v523
    %v527 = vsel %vm439, 0, %v525
    %v528 = vcosq.f32.pop %v526
    %v529 = vsinq.f32.pop %v526
    %vm530 = vweird.f32 %v123
    %v531 = vadd.s32 %v527, 3
    %v532 = vand.u32 %v531, 3
    %vm533 = vcmp.lt.s32.totalorder %v532, 2
    %vm534 = vcmp.eq.s32.totalorder %v532, 0
    %v535 = vxor.u32 %v529, 2147483648
    %v536 = vsel %vm534, %v528, %v535
    %vm537 = vcmp.eq.s32.totalorder %v532, 2
    %v538 = vxor.u32 %v528, 2147483648
    %v539 = vsel %vm537, %v538, %v529
    %v540 = vsel %vm533, %v536, %v539
    %v541 = vsel %vm530, nan, %v540
    %542 = vst [vmem:[#allocation2] sm:$0xff] %v229
    %543 = vst [vmem:[#allocation2 + $0x8] sm:$0xff] %v333
    %544 = vst [vmem:[#allocation2 + $0x10] sm:$0xff] %v437
    %545 = vst [vmem:[#allocation2 + $0x18] sm:$0xff] %v541
    // Predicated region
    $region14: #{tpu_custom_call.1} parent=1 // pred_check
      _
    $region15: #{tpu_custom_call.1} parent=1 // pred_check_branch
      %547 = sbr.rel (0) target = $region17
    $region16: #{tpu_custom_call.1} parent=1 // pred_region
      %s549 = ssub.s32 512, 512
      %550 = vsyncadd [#allocation3], %s549
      %s551 = sshll.u32 [#allocation2], 4
      %s552 = int_to_ptr.vmem [resolvable:$true] %s551
      %557 = dma.vmem_to_hbm [thread:$0]  %s552, 512, %s3, [#allocation3], 128, 128, 8
    $region17: #{tpu_custom_call.1} parent=1 // pred_fallthru
      _
    // Predicated region
    $region18: #{tpu_custom_call.1} parent=1 // pred_check
      _
    $region19: #{tpu_custom_call.1} parent=1 // pred_check_branch
      %559 = sbr.rel (0) target = $region21
    $region20: #{tpu_custom_call.1} parent=1 // pred_region
      %560 = dma.done [#allocation3], 512
    $region21: #{tpu_custom_call.1} parent=1 // pred_fallthru
      _
    %561 = vsyncpa [#allocation3], 1

</llo_original>
